<compile_context>
chip_gen: v6e
topology: v6e:2x2x1
jax: 0.10.0
libtpu: 0.0.40
codegen_flags: <defaults>
</compile_context>

<pallas_src>
import functools
import math

import jax
import jax.numpy as jnp
import numpy as np
from jax import lax
from jax.experimental import pallas as pl
from jax.experimental.pallas import tpu as pltpu

EPS = 1e-5
CP = 8  # channel padding (one sublane group); Cin/Ch/Cout are padded to this


def block_kernel(x_ref, w1_ref, w2_ref, p_ref, o_ref, im_ref, *, H, W):
    """Whole Block forward, resident in VMEM.

    x_ref : (CP, L)         padded input, L = B*H*W on lanes
    w1_ref: (CP, 10*CP)     conv1 taps (9*CP cols) + zero cols for the x rows
    w2_ref: (CP, 10*CP)     conv2 taps (9*CP cols) + fused 1x1 shortcut (CP cols)
    p_ref : (CP, 8)         packed per-channel params: [g1, be1, g2, be2, b2+bsc]
    o_ref : (CP, L)         padded output
    im_ref: (10*CP, L)      im2col scratch; last CP rows hold x (shortcut operand)
    """
    _, L = x_ref.shape
    HW = H * W
    inv_cnt = 1.0 / float(L)

    x = x_ref[...]
    p = p_ref[...]

    # Shortcut operand lives in the last CP rows of the im2col slab; writing it
    # up-front also keeps conv1's (zero-weighted) extra rows finite.
    im_ref[pl.ds(9 * CP, CP), :] = x

    # ---- per-tap boundary masks (float 0/1), computed once ------------------
    lane = lax.broadcasted_iota(jnp.int32, (1, L), 1)
    pix = jnp.bitwise_and(lane, HW - 1)            # pixel index within its image
    xcol = jnp.bitwise_and(lane, W - 1)            # x coordinate within its row
    y_lo, y_hi = pix >= W, pix < (H - 1) * W
    x_lo, x_hi = xcol >= 1, xcol <= W - 2
    tap_mask = []
    for dy in range(3):
        for dx in range(3):
            cs = []
            if dy == 0:
                cs.append(y_lo)
            if dy == 2:
                cs.append(y_hi)
            if dx == 0:
                cs.append(x_lo)
            if dx == 2:
                cs.append(x_hi)
            if not cs:
                tap_mask.append(None)
            else:
                m = cs[0]
                for c in cs[1:]:
                    m = jnp.logical_and(m, c)
                tap_mask.append(m.astype(jnp.float32))

    def bn_relu(h, gcol, bcol):
        # single-pass batch stats (sum, sum-of-squares) -> per-channel scale/shift
        s = jnp.sum(h, axis=1, keepdims=True)
        ss = jnp.sum(h * h, axis=1, keepdims=True)
        mu = s * inv_cnt
        var = ss * inv_cnt - mu * mu               # biased (training-mode) variance
        scale = p[:, gcol:gcol + 1] * lax.rsqrt(var + EPS)
        shift = p[:, bcol:bcol + 1] - mu * scale
        return jnp.maximum(h * scale + shift, 0.0)

    def im2col(h):
        # h: (CP, L); write the 9 shifted/masked taps into rows [0, 9*CP).
        # Roll wrap across image/batch boundaries is always zeroed by the mask.
        for t in range(9):
            dy, dx = divmod(t, 3)
            off = (dy - 1) * W + (dx - 1)
            piece = h if off == 0 else pltpu.roll(h, shift=(-off) % L, axis=1)
            if tap_mask[t] is not None:
                piece = piece * tap_mask[t]
            im_ref[pl.ds(t * CP, CP), :] = piece

    # ---- residual path (conv1 bias omitted: cancelled by BN2 mean-sub) ------
    h1 = bn_relu(x, 0, 1)
    im2col(h1)
    a1 = jnp.dot(w1_ref[...], im_ref[...], preferred_element_type=jnp.float32)

    h2 = bn_relu(a1, 2, 3)
    im2col(h2)                                     # rows [9*CP, 10*CP) still hold x
    out = jnp.dot(w2_ref[...], im_ref[...], preferred_element_type=jnp.float32)

    o_ref[...] = out + p[:, 4:5]                   # fused (b2 + bsc)


@jax.jit
def block_forward(x_nchw, w1_hwio, b1, w2_hwio, b2, wsc, bsc, g1, be1, g2, be2):
    """Wrapper: NCHW in / NCHW out; conv weights given as HWIO."""
    del b1  # mathematically redundant: absorbed by BN2's mean subtraction
    B, Cin, H, W = x_nchw.shape
    Ch, Cout = w1_hwio.shape[3], w2_hwio.shape[3]
    HW, L = H * W, B * H * W
    assert HW & (HW - 1) == 0 and W & (W - 1) == 0, "masks assume pow2 H*W and W"
    assert max(Cin, Ch, Cout) <= CP

    f32 = jnp.float32
    # Activations: channels on sublanes (padded to CP), batch folded into lanes.
    x_cl = x_nchw.astype(f32).transpose(1, 0, 2, 3).reshape(Cin, L)
    x_pad = jnp.zeros((CP, L), f32).at[:Cin].set(x_cl)

    # conv1 weights -> (CP, 9*CP) with zero-padded in/out channels, plus CP zero
    # columns so it contracts against the full 10*CP-row im2col slab.
    w1p = jnp.zeros((3, 3, CP, CP), f32).at[:, :, :Cin, :Ch].set(w1_hwio)
    w1_mat = w1p.reshape(9, CP, CP).transpose(2, 0, 1).reshape(CP, 9 * CP)
    w1_ext = jnp.concatenate([w1_mat, jnp.zeros((CP, CP), f32)], axis=1)

    # conv2 weights + fused 1x1 shortcut -> (CP, 10*CP)
    w2p = jnp.zeros((3, 3, CP, CP), f32).at[:, :, :Ch, :Cout].set(w2_hwio)
    w2_mat = w2p.reshape(9, CP, CP).transpose(2, 0, 1).reshape(CP, 9 * CP)
    wsc_pad = jnp.zeros((CP, CP), f32).at[:Cout, :Cin].set(wsc.T)
    w2sc = jnp.concatenate([w2_mat, wsc_pad], axis=1)

    # One packed per-channel parameter slab (sublane = channel, lane = param id).
    params = (jnp.zeros((CP, 8), f32)
              .at[:Cin, 0].set(g1).at[:Cin, 1].set(be1)
              .at[:Ch, 2].set(g2).at[:Ch, 3].set(be2)
              .at[:Cout, 4].set(b2 + bsc))

    kernel = functools.partial(block_kernel, H=H, W=W)
    out = pl.pallas_call(
        kernel,
        out_shape=jax.ShapeDtypeStruct((CP, L), f32),
        in_specs=[pl.BlockSpec(memory_space=pltpu.MemorySpace.VMEM)] * 4,
        out_specs=pl.BlockSpec(memory_space=pltpu.MemorySpace.VMEM),
        scratch_shapes=[pltpu.VMEM((10 * CP, L), f32)],
    )(x_pad, w1_ext, w2sc, params)

    # free-ish small relayout back to NCHW
    return out[:Cout].reshape(Cout, B, H, W).transpose(1, 0, 2, 3)


# ----------------------------- pure-JAX reference ----------------------------
def _bn_train(h, gamma, beta):
    mu = jnp.mean(h, axis=(0, 2, 3), keepdims=True)
    var = jnp.mean((h - mu) ** 2, axis=(0, 2, 3), keepdims=True)
    return ((h - mu) / jnp.sqrt(var + EPS)) * gamma.reshape(1, -1, 1, 1) \
        + beta.reshape(1, -1, 1, 1)


def _conv_nchw(x, w_hwio, b, pad):
    w_oihw = jnp.transpose(w_hwio, (3, 2, 0, 1))
    y = lax.conv_general_dilated(x, w_oihw, (1, 1), [(pad, pad), (pad, pad)],
                                 dimension_numbers=("NCHW", "OIHW", "NCHW"),
                                 precision=lax.Precision.HIGHEST)
    return y + b.reshape(1, -1, 1, 1)


def block_reference(x, w1, b1, w2, b2, wsc, bsc, g1, be1, g2, be2):
    h = jnp.maximum(_bn_train(x, g1, be1), 0.0)
    h = _conv_nchw(h, w1, b1, 1)
    h = jnp.maximum(_bn_train(h, g2, be2), 0.0)
    h = _conv_nchw(h, w2, b2, 1)
    sc = _conv_nchw(x, wsc.reshape(1, 1, *wsc.shape), bsc, 0)
    return h + sc


# ------------------------------------ main -----------------------------------
def _xavier_uniform(key, shape_hwio, gain):
    kh, kw, cin, cout = shape_hwio
    fan_in, fan_out = cin * kh * kw, cout * kh * kw
    bound = gain * math.sqrt(6.0 / (fan_in + fan_out))
    return jax.random.uniform(key, shape_hwio, jnp.float32, -bound, bound)


if __name__ == "__main__":
    B, Cin, H, W = 2, 4, 16, 16
    Ch = Cout = 8                       # hidden_channels defaults to out_channels

    key = jax.random.PRNGKey(0)
    kx, k1, k2, k3, kb1, kb2, kb3 = jax.random.split(key, 7)

    x = jax.random.normal(kx, (B, Cin, H, W), jnp.float32)

    w1 = _xavier_uniform(k1, (3, 3, Cin, Ch), math.sqrt(2.0))
    w2 = _xavier_uniform(k2, (3, 3, Ch, Cout), math.sqrt(2.0))
    wsc = _xavier_uniform(k3, (1, 1, Cin, Cout), 1.0).reshape(Cin, Cout)
    b1 = 0.1 * jax.random.normal(kb1, (Ch,), jnp.float32)
    b2 = 0.1 * jax.random.normal(kb2, (Cout,), jnp.float32)
    bsc = 0.1 * jax.random.normal(kb3, (Cout,), jnp.float32)

    g1, be1 = jnp.ones((Cin,), jnp.float32), jnp.zeros((Cin,), jnp.float32)
    g2, be2 = jnp.ones((Ch,), jnp.float32), jnp.zeros((Ch,), jnp.float32)

    out = block_forward(x, w1, b1, w2, b2, wsc, bsc, g1, be1, g2, be2)
    out = jax.block_until_ready(out)

    ref = block_reference(x, w1, b1, w2, b2, wsc, bsc, g1, be1, g2, be2)
    np.testing.assert_allclose(np.asarray(out), np.asarray(ref),
                               rtol=1e-3, atol=1e-3)

    print("KERNEL_OK")
</pallas_src>

<mosaic_0001>
module attributes {stable_mosaic.version = 11 : i64} {
  func.func @block_kernel(%arg0: memref<8x512xf32, #tpu.memory_space<vmem>>, %arg1: memref<8x80xf32, #tpu.memory_space<vmem>>, %arg2: memref<8x80xf32, #tpu.memory_space<vmem>>, %arg3: memref<8x8xf32, #tpu.memory_space<vmem>>, %arg4: memref<8x512xf32, #tpu.memory_space<vmem>>, %arg5: memref<80x512xf32, #tpu.memory_space<vmem>>) attributes {dimension_semantics = [], scalar_prefetch = 0 : i64, scratch_operands = 1 : i64, tpu.core_type = #tpu.core_type<tc>} {
    %c0 = arith.constant 0 : index
    %c0_0 = arith.constant 0 : index
    %0 = vector.load %arg0[%c0, %c0_0] : memref<8x512xf32, #tpu.memory_space<vmem>>, vector<8x512xf32>
    %c0_1 = arith.constant 0 : index
    %c0_2 = arith.constant 0 : index
    %1 = vector.load %arg3[%c0_1, %c0_2] : memref<8x8xf32, #tpu.memory_space<vmem>>, vector<8x8xf32>
    %c72 = arith.constant 72 : index
    %c0_3 = arith.constant 0 : index
    %2 = vector.load %arg5[%c72, %c0_3] : memref<80x512xf32, #tpu.memory_space<vmem>>, vector<8x512xf32>
    tpu.vector_store %arg5[%c72, %c0_3], %0 {strides = array<i32>} : memref<80x512xf32, #tpu.memory_space<vmem>>, vector<8x512xf32>,
    %3 = tpu.iota {dimensions = array<i32: 1>} : vector<1x512xi32>
    %c255_i32 = arith.constant 255 : i32
    %4 = vector.broadcast %c255_i32 : i32 to vector<1x512xi32>
    %5 = arith.andi %3, %4 : vector<1x512xi32>
    %c15_i32 = arith.constant 15 : i32
    %6 = vector.broadcast %c15_i32 : i32 to vector<1x512xi32>
    %7 = arith.andi %3, %6 : vector<1x512xi32>
    %c16_i32 = arith.constant 16 : i32
    %8 = vector.broadcast %c16_i32 : i32 to vector<1x512xi32>
    %9 = arith.cmpi sge, %5, %8 : vector<1x512xi32>
    %c240_i32 = arith.constant 240 : i32
    %10 = vector.broadcast %c240_i32 : i32 to vector<1x512xi32>
    %11 = arith.cmpi slt, %5, %10 : vector<1x512xi32>
    %c1_i32 = arith.constant 1 : i32
    %12 = vector.broadcast %c1_i32 : i32 to vector<1x512xi32>
    %13 = arith.cmpi sge, %7, %12 : vector<1x512xi32>
    %c14_i32 = arith.constant 14 : i32
    %14 = vector.broadcast %c14_i32 : i32 to vector<1x512xi32>
    %15 = arith.cmpi sle, %7, %14 : vector<1x512xi32>
    %16 = arith.andi %9, %13 : vector<1x512xi1>
    %17 = arith.extui %16 : vector<1x512xi1> to vector<1x512xi32>
    %18 = arith.sitofp %17 : vector<1x512xi32> to vector<1x512xf32>
    %19 = arith.extui %9 : vector<1x512xi1> to vector<1x512xi32>
    %20 = arith.sitofp %19 : vector<1x512xi32> to vector<1x512xf32>
    %21 = arith.andi %9, %15 : vector<1x512xi1>
    %22 = arith.extui %21 : vector<1x512xi1> to vector<1x512xi32>
    %23 = arith.sitofp %22 : vector<1x512xi32> to vector<1x512xf32>
    %24 = arith.extui %13 : vector<1x512xi1> to vector<1x512xi32>
    %25 = arith.sitofp %24 : vector<1x512xi32> to vector<1x512xf32>
    %26 = arith.extui %15 : vector<1x512xi1> to vector<1x512xi32>
    %27 = arith.sitofp %26 : vector<1x512xi32> to vector<1x512xf32>
    %28 = arith.andi %11, %13 : vector<1x512xi1>
    %29 = arith.extui %28 : vector<1x512xi1> to vector<1x512xi32>
    %30 = arith.sitofp %29 : vector<1x512xi32> to vector<1x512xf32>
    %31 = arith.extui %11 : vector<1x512xi1> to vector<1x512xi32>
    %32 = arith.sitofp %31 : vector<1x512xi32> to vector<1x512xf32>
    %33 = arith.andi %11, %15 : vector<1x512xi1>
    %34 = arith.extui %33 : vector<1x512xi1> to vector<1x512xi32>
    %35 = arith.sitofp %34 : vector<1x512xi32> to vector<1x512xf32>
    %cst = arith.constant dense<0.000000e+00> : vector<8xf32>
    %36 = vector.multi_reduction <add>, %0, %cst [1] : vector<8x512xf32> to vector<8xf32>
    %37 = vector.shape_cast %36 : vector<8xf32> to vector<8x1xf32>
    %38 = arith.mulf %0, %0 : vector<8x512xf32>
    %cst_4 = arith.constant dense<0.000000e+00> : vector<8xf32>
    %39 = vector.multi_reduction <add>, %38, %cst_4 [1] : vector<8x512xf32> to vector<8xf32>
    %40 = vector.shape_cast %39 : vector<8xf32> to vector<8x1xf32>
    %cst_5 = arith.constant 0.001953125 : f32
    %41 = vector.broadcast %cst_5 : f32 to vector<8x1xf32>
    %42 = arith.mulf %37, %41 : vector<8x1xf32>
    %cst_6 = arith.constant 0.001953125 : f32
    %43 = vector.broadcast %cst_6 : f32 to vector<8x1xf32>
    %44 = arith.mulf %40, %43 : vector<8x1xf32>
    %45 = arith.mulf %42, %42 : vector<8x1xf32>
    %46 = arith.subf %44, %45 : vector<8x1xf32>
    %47 = vector.extract_strided_slice %1 {offsets = [0, 0], sizes = [8, 1], strides = [1, 1]} : vector<8x8xf32> to vector<8x1xf32>
    %cst_7 = arith.constant 9.99999974E-6 : f32
    %48 = vector.broadcast %cst_7 : f32 to vector<8x1xf32>
    %49 = arith.addf %46, %48 : vector<8x1xf32>
    %50 = math.rsqrt %49 : vector<8x1xf32>
    %51 = arith.mulf %47, %50 : vector<8x1xf32>
    %52 = vector.extract_strided_slice %1 {offsets = [0, 1], sizes = [8, 1], strides = [1, 1]} : vector<8x8xf32> to vector<8x1xf32>
    %53 = arith.mulf %42, %51 : vector<8x1xf32>
    %54 = arith.subf %52, %53 : vector<8x1xf32>
    %55 = vector.broadcast %51 : vector<8x1xf32> to vector<8x512xf32>
    %56 = arith.mulf %0, %55 : vector<8x512xf32>
    %57 = vector.broadcast %54 : vector<8x1xf32> to vector<8x512xf32>
    %58 = arith.addf %56, %57 : vector<8x512xf32>
    %cst_8 = arith.constant 0.000000e+00 : f32
    %59 = vector.broadcast %cst_8 : f32 to vector<8x512xf32>
    %60 = arith.maximumf %58, %59 : vector<8x512xf32>
    %c17_i32 = arith.constant 17 : i32
    %61 = tpu.dynamic_rotate %60 by %c17_i32 dim 1 : vector<8x512xf32>, i32 -> vector<8x512xf32>
    %62 = vector.broadcast %18 : vector<1x512xf32> to vector<8x512xf32>
    %63 = arith.mulf %61, %62 : vector<8x512xf32>
    %c0_9 = arith.constant 0 : index
    %c0_10 = arith.constant 0 : index
    %64 = vector.load %arg5[%c0_9, %c0_10] : memref<80x512xf32, #tpu.memory_space<vmem>>, vector<8x512xf32>
    tpu.vector_store %arg5[%c0_9, %c0_10], %63 {strides = array<i32>} : memref<80x512xf32, #tpu.memory_space<vmem>>, vector<8x512xf32>,
    %c16_i32_11 = arith.constant 16 : i32
    %65 = tpu.dynamic_rotate %60 by %c16_i32_11 dim 1 : vector<8x512xf32>, i32 -> vector<8x512xf32>
    %66 = vector.broadcast %20 : vector<1x512xf32> to vector<8x512xf32>
    %67 = arith.mulf %65, %66 : vector<8x512xf32>
    %c8 = arith.constant 8 : index
    %c0_12 = arith.constant 0 : index
    %68 = vector.load %arg5[%c8, %c0_12] : memref<80x512xf32, #tpu.memory_space<vmem>>, vector<8x512xf32>
    tpu.vector_store %arg5[%c8, %c0_12], %67 {strides = array<i32>} : memref<80x512xf32, #tpu.memory_space<vmem>>, vector<8x512xf32>,
    %c15_i32_13 = arith.constant 15 : i32
    %69 = tpu.dynamic_rotate %60 by %c15_i32_13 dim 1 : vector<8x512xf32>, i32 -> vector<8x512xf32>
    %70 = vector.broadcast %23 : vector<1x512xf32> to vector<8x512xf32>
    %71 = arith.mulf %69, %70 : vector<8x512xf32>
    %c16 = arith.constant 16 : index
    %c0_14 = arith.constant 0 : index
    %72 = vector.load %arg5[%c16, %c0_14] : memref<80x512xf32, #tpu.memory_space<vmem>>, vector<8x512xf32>
    tpu.vector_store %arg5[%c16, %c0_14], %71 {strides = array<i32>} : memref<80x512xf32, #tpu.memory_space<vmem>>, vector<8x512xf32>,
    %c1_i32_15 = arith.constant 1 : i32
    %73 = tpu.dynamic_rotate %60 by %c1_i32_15 dim 1 : vector<8x512xf32>, i32 -> vector<8x512xf32>
    %74 = vector.broadcast %25 : vector<1x512xf32> to vector<8x512xf32>
    %75 = arith.mulf %73, %74 : vector<8x512xf32>
    %c24 = arith.constant 24 : index
    %c0_16 = arith.constant 0 : index
    %76 = vector.load %arg5[%c24, %c0_16] : memref<80x512xf32, #tpu.memory_space<vmem>>, vector<8x512xf32>
    tpu.vector_store %arg5[%c24, %c0_16], %75 {strides = array<i32>} : memref<80x512xf32, #tpu.memory_space<vmem>>, vector<8x512xf32>,
    %c32 = arith.constant 32 : index
    %c0_17 = arith.constant 0 : index
    %77 = vector.load %arg5[%c32, %c0_17] : memref<80x512xf32, #tpu.memory_space<vmem>>, vector<8x512xf32>
    tpu.vector_store %arg5[%c32, %c0_17], %60 {strides = array<i32>} : memref<80x512xf32, #tpu.memory_space<vmem>>, vector<8x512xf32>,
    %c511_i32 = arith.constant 511 : i32
    %78 = tpu.dynamic_rotate %60 by %c511_i32 dim 1 : vector<8x512xf32>, i32 -> vector<8x512xf32>
    %79 = vector.broadcast %27 : vector<1x512xf32> to vector<8x512xf32>
    %80 = arith.mulf %78, %79 : vector<8x512xf32>
    %c40 = arith.constant 40 : index
    %c0_18 = arith.constant 0 : index
    %81 = vector.load %arg5[%c40, %c0_18] : memref<80x512xf32, #tpu.memory_space<vmem>>, vector<8x512xf32>
    tpu.vector_store %arg5[%c40, %c0_18], %80 {strides = array<i32>} : memref<80x512xf32, #tpu.memory_space<vmem>>, vector<8x512xf32>,
    %c497_i32 = arith.constant 497 : i32
    %82 = tpu.dynamic_rotate %60 by %c497_i32 dim 1 : vector<8x512xf32>, i32 -> vector<8x512xf32>
    %83 = vector.broadcast %30 : vector<1x512xf32> to vector<8x512xf32>
    %84 = arith.mulf %82, %83 : vector<8x512xf32>
    %c48 = arith.constant 48 : index
    %c0_19 = arith.constant 0 : index
    %85 = vector.load %arg5[%c48, %c0_19] : memref<80x512xf32, #tpu.memory_space<vmem>>, vector<8x512xf32>
    tpu.vector_store %arg5[%c48, %c0_19], %84 {strides = array<i32>} : memref<80x512xf32, #tpu.memory_space<vmem>>, vector<8x512xf32>,
    %c496_i32 = arith.constant 496 : i32
    %86 = tpu.dynamic_rotate %60 by %c496_i32 dim 1 : vector<8x512xf32>, i32 -> vector<8x512xf32>
    %87 = vector.broadcast %32 : vector<1x512xf32> to vector<8x512xf32>
    %88 = arith.mulf %86, %87 : vector<8x512xf32>
    %c56 = arith.constant 56 : index
    %c0_20 = arith.constant 0 : index
    %89 = vector.load %arg5[%c56, %c0_20] : memref<80x512xf32, #tpu.memory_space<vmem>>, vector<8x512xf32>
    tpu.vector_store %arg5[%c56, %c0_20], %88 {strides = array<i32>} : memref<80x512xf32, #tpu.memory_space<vmem>>, vector<8x512xf32>,
    %c495_i32 = arith.constant 495 : i32
    %90 = tpu.dynamic_rotate %60 by %c495_i32 dim 1 : vector<8x512xf32>, i32 -> vector<8x512xf32>
    %91 = vector.broadcast %35 : vector<1x512xf32> to vector<8x512xf32>
    %92 = arith.mulf %90, %91 : vector<8x512xf32>
    %c64 = arith.constant 64 : index
    %c0_21 = arith.constant 0 : index
    %93 = vector.load %arg5[%c64, %c0_21] : memref<80x512xf32, #tpu.memory_space<vmem>>, vector<8x512xf32>
    tpu.vector_store %arg5[%c64, %c0_21], %92 {strides = array<i32>} : memref<80x512xf32, #tpu.memory_space<vmem>>, vector<8x512xf32>,
    %c0_22 = arith.constant 0 : index
    %c0_23 = arith.constant 0 : index
    %94 = vector.load %arg1[%c0_22, %c0_23] : memref<8x80xf32, #tpu.memory_space<vmem>>, vector<8x80xf32>
    %c0_24 = arith.constant 0 : index
    %c0_25 = arith.constant 0 : index
    %95 = vector.load %arg5[%c0_24, %c0_25] : memref<80x512xf32, #tpu.memory_space<vmem>>, vector<80x512xf32>
    %cst_26 = arith.constant dense<0.000000e+00> : vector<8x512xf32>
    %96 = tpu.matmul %94, %95, %cst_26 {dimension_numbers = #tpu.dot_dimension_numbers<[1], [0], [0], [1], [0, 0, 1, 1], [], []>} : vector<8x80xf32>, vector<80x512xf32>, vector<8x512xf32> -> vector<8x512xf32>
    %cst_27 = arith.constant dense<0.000000e+00> : vector<8xf32>
    %97 = vector.multi_reduction <add>, %96, %cst_27 [1] : vector<8x512xf32> to vector<8xf32>
    %98 = vector.shape_cast %97 : vector<8xf32> to vector<8x1xf32>
    %99 = arith.mulf %96, %96 : vector<8x512xf32>
    %cst_28 = arith.constant dense<0.000000e+00> : vector<8xf32>
    %100 = vector.multi_reduction <add>, %99, %cst_28 [1] : vector<8x512xf32> to vector<8xf32>
    %101 = vector.shape_cast %100 : vector<8xf32> to vector<8x1xf32>
    %cst_29 = arith.constant 0.001953125 : f32
    %102 = vector.broadcast %cst_29 : f32 to vector<8x1xf32>
    %103 = arith.mulf %98, %102 : vector<8x1xf32>
    %cst_30 = arith.constant 0.001953125 : f32
    %104 = vector.broadcast %cst_30 : f32 to vector<8x1xf32>
    %105 = arith.mulf %101, %104 : vector<8x1xf32>
    %106 = arith.mulf %103, %103 : vector<8x1xf32>
    %107 = arith.subf %105, %106 : vector<8x1xf32>
    %108 = vector.extract_strided_slice %1 {offsets = [0, 2], sizes = [8, 1], strides = [1, 1]} : vector<8x8xf32> to vector<8x1xf32>
    %cst_31 = arith.constant 9.99999974E-6 : f32
    %109 = vector.broadcast %cst_31 : f32 to vector<8x1xf32>
    %110 = arith.addf %107, %109 : vector<8x1xf32>
    %111 = math.rsqrt %110 : vector<8x1xf32>
    %112 = arith.mulf %108, %111 : vector<8x1xf32>
    %113 = vector.extract_strided_slice %1 {offsets = [0, 3], sizes = [8, 1], strides = [1, 1]} : vector<8x8xf32> to vector<8x1xf32>
    %114 = arith.mulf %103, %112 : vector<8x1xf32>
    %115 = arith.subf %113, %114 : vector<8x1xf32>
    %116 = vector.broadcast %112 : vector<8x1xf32> to vector<8x512xf32>
    %117 = arith.mulf %96, %116 : vector<8x512xf32>
    %118 = vector.broadcast %115 : vector<8x1xf32> to vector<8x512xf32>
    %119 = arith.addf %117, %118 : vector<8x512xf32>
    %cst_32 = arith.constant 0.000000e+00 : f32
    %120 = vector.broadcast %cst_32 : f32 to vector<8x512xf32>
    %121 = arith.maximumf %119, %120 : vector<8x512xf32>
    %c17_i32_33 = arith.constant 17 : i32
    %122 = tpu.dynamic_rotate %121 by %c17_i32_33 dim 1 : vector<8x512xf32>, i32 -> vector<8x512xf32>
    %123 = vector.broadcast %18 : vector<1x512xf32> to vector<8x512xf32>
    %124 = arith.mulf %122, %123 : vector<8x512xf32>
    %c0_34 = arith.constant 0 : index
    %c0_35 = arith.constant 0 : index
    %125 = vector.load %arg5[%c0_34, %c0_35] : memref<80x512xf32, #tpu.memory_space<vmem>>, vector<8x512xf32>
    tpu.vector_store %arg5[%c0_34, %c0_35], %124 {strides = array<i32>} : memref<80x512xf32, #tpu.memory_space<vmem>>, vector<8x512xf32>,
    %c16_i32_36 = arith.constant 16 : i32
    %126 = tpu.dynamic_rotate %121 by %c16_i32_36 dim 1 : vector<8x512xf32>, i32 -> vector<8x512xf32>
    %127 = vector.broadcast %20 : vector<1x512xf32> to vector<8x512xf32>
    %128 = arith.mulf %126, %127 : vector<8x512xf32>
    %c8_37 = arith.constant 8 : index
    %c0_38 = arith.constant 0 : index
    %129 = vector.load %arg5[%c8_37, %c0_38] : memref<80x512xf32, #tpu.memory_space<vmem>>, vector<8x512xf32>
    tpu.vector_store %arg5[%c8_37, %c0_38], %128 {strides = array<i32>} : memref<80x512xf32, #tpu.memory_space<vmem>>, vector<8x512xf32>,
    %c15_i32_39 = arith.constant 15 : i32
    %130 = tpu.dynamic_rotate %121 by %c15_i32_39 dim 1 : vector<8x512xf32>, i32 -> vector<8x512xf32>
    %131 = vector.broadcast %23 : vector<1x512xf32> to vector<8x512xf32>
    %132 = arith.mulf %130, %131 : vector<8x512xf32>
    %c16_40 = arith.constant 16 : index
    %c0_41 = arith.constant 0 : index
    %133 = vector.load %arg5[%c16_40, %c0_41] : memref<80x512xf32, #tpu.memory_space<vmem>>, vector<8x512xf32>
    tpu.vector_store %arg5[%c16_40, %c0_41], %132 {strides = array<i32>} : memref<80x512xf32, #tpu.memory_space<vmem>>, vector<8x512xf32>,
    %c1_i32_42 = arith.constant 1 : i32
    %134 = tpu.dynamic_rotate %121 by %c1_i32_42 dim 1 : vector<8x512xf32>, i32 -> vector<8x512xf32>
    %135 = vector.broadcast %25 : vector<1x512xf32> to vector<8x512xf32>
    %136 = arith.mulf %134, %135 : vector<8x512xf32>
    %c24_43 = arith.constant 24 : index
    %c0_44 = arith.constant 0 : index
    %137 = vector.load %arg5[%c24_43, %c0_44] : memref<80x512xf32, #tpu.memory_space<vmem>>, vector<8x512xf32>
    tpu.vector_store %arg5[%c24_43, %c0_44], %136 {strides = array<i32>} : memref<80x512xf32, #tpu.memory_space<vmem>>, vector<8x512xf32>,
    %c32_45 = arith.constant 32 : index
    %c0_46 = arith.constant 0 : index
    %138 = vector.load %arg5[%c32_45, %c0_46] : memref<80x512xf32, #tpu.memory_space<vmem>>, vector<8x512xf32>
    tpu.vector_store %arg5[%c32_45, %c0_46], %121 {strides = array<i32>} : memref<80x512xf32, #tpu.memory_space<vmem>>, vector<8x512xf32>,
    %c511_i32_47 = arith.constant 511 : i32
    %139 = tpu.dynamic_rotate %121 by %c511_i32_47 dim 1 : vector<8x512xf32>, i32 -> vector<8x512xf32>
    %140 = vector.broadcast %27 : vector<1x512xf32> to vector<8x512xf32>
    %141 = arith.mulf %139, %140 : vector<8x512xf32>
    %c40_48 = arith.constant 40 : index
    %c0_49 = arith.constant 0 : index
    %142 = vector.load %arg5[%c40_48, %c0_49] : memref<80x512xf32, #tpu.memory_space<vmem>>, vector<8x512xf32>
    tpu.vector_store %arg5[%c40_48, %c0_49], %141 {strides = array<i32>} : memref<80x512xf32, #tpu.memory_space<vmem>>, vector<8x512xf32>,
    %c497_i32_50 = arith.constant 497 : i32
    %143 = tpu.dynamic_rotate %121 by %c497_i32_50 dim 1 : vector<8x512xf32>, i32 -> vector<8x512xf32>
    %144 = vector.broadcast %30 : vector<1x512xf32> to vector<8x512xf32>
    %145 = arith.mulf %143, %144 : vector<8x512xf32>
    %c48_51 = arith.constant 48 : index
    %c0_52 = arith.constant 0 : index
    %146 = vector.load %arg5[%c48_51, %c0_52] : memref<80x512xf32, #tpu.memory_space<vmem>>, vector<8x512xf32>
    tpu.vector_store %arg5[%c48_51, %c0_52], %145 {strides = array<i32>} : memref<80x512xf32, #tpu.memory_space<vmem>>, vector<8x512xf32>,
    %c496_i32_53 = arith.constant 496 : i32
    %147 = tpu.dynamic_rotate %121 by %c496_i32_53 dim 1 : vector<8x512xf32>, i32 -> vector<8x512xf32>
    %148 = vector.broadcast %32 : vector<1x512xf32> to vector<8x512xf32>
    %149 = arith.mulf %147, %148 : vector<8x512xf32>
    %c56_54 = arith.constant 56 : index
    %c0_55 = arith.constant 0 : index
    %150 = vector.load %arg5[%c56_54, %c0_55] : memref<80x512xf32, #tpu.memory_space<vmem>>, vector<8x512xf32>
    tpu.vector_store %arg5[%c56_54, %c0_55], %149 {strides = array<i32>} : memref<80x512xf32, #tpu.memory_space<vmem>>, vector<8x512xf32>,
    %c495_i32_56 = arith.constant 495 : i32
    %151 = tpu.dynamic_rotate %121 by %c495_i32_56 dim 1 : vector<8x512xf32>, i32 -> vector<8x512xf32>
    %152 = vector.broadcast %35 : vector<1x512xf32> to vector<8x512xf32>
    %153 = arith.mulf %151, %152 : vector<8x512xf32>
    %c64_57 = arith.constant 64 : index
    %c0_58 = arith.constant 0 : index
    %154 = vector.load %arg5[%c64_57, %c0_58] : memref<80x512xf32, #tpu.memory_space<vmem>>, vector<8x512xf32>
    tpu.vector_store %arg5[%c64_57, %c0_58], %153 {strides = array<i32>} : memref<80x512xf32, #tpu.memory_space<vmem>>, vector<8x512xf32>,
    %c0_59 = arith.constant 0 : index
    %c0_60 = arith.constant 0 : index
    %155 = vector.load %arg2[%c0_59, %c0_60] : memref<8x80xf32, #tpu.memory_space<vmem>>, vector<8x80xf32>
    %c0_61 = arith.constant 0 : index
    %c0_62 = arith.constant 0 : index
    %156 = vector.load %arg5[%c0_61, %c0_62] : memref<80x512xf32, #tpu.memory_space<vmem>>, vector<80x512xf32>
    %cst_63 = arith.constant dense<0.000000e+00> : vector<8x512xf32>
    %157 = tpu.matmul %155, %156, %cst_63 {dimension_numbers = #tpu.dot_dimension_numbers<[1], [0], [0], [1], [0, 0, 1, 1], [], []>} : vector<8x80xf32>, vector<80x512xf32>, vector<8x512xf32> -> vector<8x512xf32>
    %158 = vector.extract_strided_slice %1 {offsets = [0, 4], sizes = [8, 1], strides = [1, 1]} : vector<8x8xf32> to vector<8x1xf32>
    %159 = vector.broadcast %158 : vector<8x1xf32> to vector<8x512xf32>
    %160 = arith.addf %157, %159 : vector<8x512xf32>
    %c0_64 = arith.constant 0 : index
    %c0_65 = arith.constant 0 : index
    %161 = vector.load %arg4[%c0_64, %c0_65] : memref<8x512xf32, #tpu.memory_space<vmem>>, vector<8x512xf32>
    tpu.vector_store %arg4[%c0_64, %c0_65], %160 {strides = array<i32>} : memref<8x512xf32, #tpu.memory_space<vmem>>, vector<8x512xf32>,
    return
  }
}

</mosaic_0001>

<llo_original>
// kernel: block_forward.1
$region0: #{block_forward.1}
  #allocation0 [shape = 'u32[]', space=smem, size = 0x4, offset = 0x4, fixed_abs, tag = 'smem constant byte address 0x4 - core index']
  #allocation1 [shape = 'u32[144,128]{1,0:T(1,128)}', space=vmem, size = 0x12000, scoped, tag = 'internal scratch']
  #allocation2 [shape = 'f32[80,512]{1,0:T(8,128)}', space=vmem, size = 0x28000, scoped, tag = 'scratch operand']
  %s0 = inlined_call_operand.vmem [shape: f32[8,512], index: 0, kind: input, shape index: {}]
  %s1 = inlined_call_operand.vmem [shape: f32[8,80], index: 1, kind: input, shape index: {}]
  %s2 = inlined_call_operand.vmem [shape: f32[8,80], index: 2, kind: input, shape index: {}]
  %s3 = inlined_call_operand.vmem [shape: f32[8,8], index: 3, kind: input, shape index: {}]
  %s4 = inlined_call_operand.vmem [shape: f32[8,512], index: 4, kind: output, shape index: {}]
  %s5 = sld [smem:[#allocation0]]
  $region26: #{block_forward.1} parent=0
    _
  %s7 = ssub.s32 1, %s5
  %s8 = scalar_select 0, %s7, %s5
  // Predicated region
  $region2: #{block_forward.1} parent=0 // pred_check
    _
  $region3: #{block_forward.1} parent=0 // pred_check_branch
    %10 = sbr.rel (0) target = $region5
  $region4: #{block_forward.1} parent=0 // pred_region
    _
  $region5: #{block_forward.1} parent=0 // pred_fallthru
    _
  // Predicated region
  $region6: #{block_forward.1} parent=0 // pred_check
    _
  $region7: #{block_forward.1} parent=0 // pred_check_branch
    %12 = sbr.rel (0) target = $region9
  $region8: #{block_forward.1} parent=0 // pred_region
    _
  $region9: #{block_forward.1} parent=0 // pred_fallthru
    _
  // Predicated region
  $region10: #{block_forward.1} parent=0 // pred_check
    _
  $region11: #{block_forward.1} parent=0 // pred_check_branch
    %14 = sbr.rel (0) target = $region13
  $region12: #{block_forward.1} parent=0 // pred_region
    _
  $region13: #{block_forward.1} parent=0 // pred_fallthru
    _
  // Predicated region
  $region14: #{block_forward.1} parent=0 // pred_check
    _
  $region15: #{block_forward.1} parent=0 // pred_check_branch
    %16 = sbr.rel (0) target = $region17
  $region16: #{block_forward.1} parent=0 // pred_region
    _
  $region17: #{block_forward.1} parent=0 // pred_fallthru
    _
  %v17 = vld [vmem:[%s0] sm:$0xff]
  %v18 = vld [vmem:[%s0 + $0x8] sm:$0xff]
  %v19 = vld [vmem:[%s0 + $0x10] sm:$0xff]
  %v20 = vld [vmem:[%s0 + $0x18] sm:$0xff]
  %v21 = vld [vmem:[%s3] sm:$0xff]
  %22 = vst [vmem:[#allocation2 + $0x120] sm:$0xff] %v17
  %23 = vst [vmem:[#allocation2 + $0x128] sm:$0xff] %v18
  %24 = vst [vmem:[#allocation2 + $0x130] sm:$0xff] %v19
  %25 = vst [vmem:[#allocation2 + $0x138] sm:$0xff] %v20
  %v26 = vlaneseq
  %v27 = vand.u32 %v26, 127
  %v28 = vadd.s32 %v27, 128
  %v29 = vadd.s32 %v27, 256
  %v30 = vadd.s32 %v27, 384
  %v31 = vand.u32 %v27, 255
  %v32 = vand.u32 %v28, 255
  %v33 = vand.u32 %v29, 255
  %v34 = vand.u32 %v30, 255
  %v35 = vand.u32 %v27, 15
  %v36 = vand.u32 %v28, 15
  %v37 = vand.u32 %v29, 15
  %v38 = vand.u32 %v30, 15
  %vm39 = vcmp.ge.s32.totalorder %v31, 16
  %vm40 = vcmp.ge.s32.totalorder %v32, 16
  %vm41 = vcmp.ge.s32.totalorder %v33, 16
  %vm42 = vcmp.ge.s32.totalorder %v34, 16
  %vm43 = vcmp.lt.s32.totalorder %v31, 240
  %vm44 = vcmp.lt.s32.totalorder %v32, 240
  %vm45 = vcmp.lt.s32.totalorder %v33, 240
  %vm46 = vcmp.lt.s32.totalorder %v34, 240
  %vm47 = vcmp.ge.s32.totalorder %v35, 1
  %vm48 = vcmp.ge.s32.totalorder %v36, 1
  %vm49 = vcmp.ge.s32.totalorder %v37, 1
  %vm50 = vcmp.ge.s32.totalorder %v38, 1
  %vm51 = vcmp.le.s32.totalorder %v35, 14
  %vm52 = vcmp.le.s32.totalorder %v36, 14
  %vm53 = vcmp.le.s32.totalorder %v37, 14
  %vm54 = vcmp.le.s32.totalorder %v38, 14
  %vm55 = vmand %vm39, %vm47
  %vm56 = vmand %vm40, %vm48
  %vm57 = vmand %vm41, %vm49
  %vm58 = vmand %vm42, %vm50
  %v59 = vsel %vm55, 1, 0
  %v60 = vsel %vm56, 1, 0
  %v61 = vsel %vm57, 1, 0
  %v62 = vsel %vm58, 1, 0
  %v63 = vcvt.s32.f32 %v59
  %v64 = vcvt.s32.f32 %v60
  %v65 = vcvt.s32.f32 %v61
  %v66 = vcvt.s32.f32 %v62
  %v67 = vsel %vm39, 1, 0
  %v68 = vsel %vm40, 1, 0
  %v69 = vsel %vm41, 1, 0
  %v70 = vsel %vm42, 1, 0
  %v71 = vcvt.s32.f32 %v67
  %v72 = vcvt.s32.f32 %v68
  %v73 = vcvt.s32.f32 %v69
  %v74 = vcvt.s32.f32 %v70
  %vm75 = vmand %vm39, %vm51
  %vm76 = vmand %vm40, %vm52
  %vm77 = vmand %vm41, %vm53
  %vm78 = vmand %vm42, %vm54
  %v79 = vsel %vm75, 1, 0
  %v80 = vsel %vm76, 1, 0
  %v81 = vsel %vm77, 1, 0
  %v82 = vsel %vm78, 1, 0
  %v83 = vcvt.s32.f32 %v79
  %v84 = vcvt.s32.f32 %v80
  %v85 = vcvt.s32.f32 %v81
  %v86 = vcvt.s32.f32 %v82
  %v87 = vsel %vm47, 1, 0
  %v88 = vsel %vm48, 1, 0
  %v89 = vsel %vm49, 1, 0
  %v90 = vsel %vm50, 1, 0
  %v91 = vcvt.s32.f32 %v87
  %v92 = vcvt.s32.f32 %v88
  %v93 = vcvt.s32.f32 %v89
  %v94 = vcvt.s32.f32 %v90
  %v95 = vsel %vm51, 1, 0
  %v96 = vsel %vm52, 1, 0
  %v97 = vsel %vm53, 1, 0
  %v98 = vsel %vm54, 1, 0
  %v99 = vcvt.s32.f32 %v95
  %v100 = vcvt.s32.f32 %v96
  %v101 = vcvt.s32.f32 %v97
  %v102 = vcvt.s32.f32 %v98
  %vm103 = vmand %vm43, %vm47
  %vm104 = vmand %vm44, %vm48
  %vm105 = vmand %vm45, %vm49
  %vm106 = vmand %vm46, %vm50
  %v107 = vsel %vm103, 1, 0
  %v108 = vsel %vm104, 1, 0
  %v109 = vsel %vm105, 1, 0
  %v110 = vsel %vm106, 1, 0
  %v111 = vcvt.s32.f32 %v107
  %v112 = vcvt.s32.f32 %v108
  %v113 = vcvt.s32.f32 %v109
  %v114 = vcvt.s32.f32 %v110
  %v115 = vsel %vm43, 1, 0
  %v116 = vsel %vm44, 1, 0
  %v117 = vsel %vm45, 1, 0
  %v118 = vsel %vm46, 1, 0
  %v119 = vcvt.s32.f32 %v115
  %v120 = vcvt.s32.f32 %v116
  %v121 = vcvt.s32.f32 %v117
  %v122 = vcvt.s32.f32 %v118
  %vm123 = vmand %vm43, %vm51
  %vm124 = vmand %vm44, %vm52
  %vm125 = vmand %vm45, %vm53
  %vm126 = vmand %vm46, %vm54
  %v127 = vsel %vm123, 1, 0
  %v128 = vsel %vm124, 1, 0
  %v129 = vsel %vm125, 1, 0
  %v130 = vsel %vm126, 1, 0
  %v131 = vcvt.s32.f32 %v127
  %v132 = vcvt.s32.f32 %v128
  %v133 = vcvt.s32.f32 %v129
  %v134 = vcvt.s32.f32 %v130
  %v135 = vadd.f32 %v17, %v18
  %v136 = vadd.f32 %v135, %v19
  %v137 = vadd.f32 %v136, %v20
  %138 = vadd.xlane.f32.xlu0 %v137
  %v139 = vpop.xlane.xlu0 %138
  %v140 = vmul.f32 %v17, %v17
  %v141 = vmul.f32 %v18, %v18
  %v142 = vmul.f32 %v19, %v19
  %v143 = vmul.f32 %v20, %v20
  %v144 = vadd.f32 %v140, %v141
  %v145 = vadd.f32 %v144, %v142
  %v146 = vadd.f32 %v145, %v143
  %147 = vadd.xlane.f32.xlu0 %v146
  %v148 = vpop.xlane.xlu0 %147
  %v149 = vmul.f32 %v139, 0.001953125
  %v150 = vmul.f32 %v148, 0.001953125
  %v151 = vmul.f32 %v149, %v149
  %v152 = vsub.f32 %v150, %v151
  %v153 = vadd.f32 %v152, 1e-05
  %v154 = vrsqrt.pop %v153
  %v155 = vmul.f32 %v21, %v154
  %v156 = vmul.f32 %v149, %v155
  %158 = vrot.lane.b32.xlu0 %v156, 1
  %v159 = vpop.permute.xlu0 %158
  %v161 = vsub.f32 %v21, %v159
  %163 = vset.pattern.permute.xlu0 0
  %164 = vperm.xlu0 %163, %v155
  %v165 = vpop.permute.xlu0 %164
  %v167 = vmul.f32 %v17, %v165
  %v168 = vmul.f32 %v18, %v165
  %v169 = vmul.f32 %v19, %v165
  %v170 = vmul.f32 %v20, %v165
  %172 = vset.pattern.permute.xlu0 1
  %173 = vperm.xlu0 %172, %v161
  %v174 = vpop.permute.xlu0 %173
  %v176 = vadd.f32 %v167, %v174
  %v177 = vadd.f32 %v168, %v174
  %v178 = vadd.f32 %v169, %v174
  %v179 = vadd.f32 %v170, %v174
  %v180 = vmax.f32 %v176, 0.0
  %v181 = vmax.f32 %v177, 0.0
  %v182 = vmax.f32 %v178, 0.0
  %v183 = vmax.f32 %v179, 0.0
  %184 = vrot.lane.b32.xlu0 %v180, 17
  %v185 = vpop.permute.xlu0 %184
  %186 = vrot.lane.b32.xlu0 %v181, 17
  %v187 = vpop.permute.xlu0 %186
  %188 = vrot.lane.b32.xlu0 %v182, 17
  %v189 = vpop.permute.xlu0 %188
  %190 = vrot.lane.b32.xlu0 %v183, 17
  %v191 = vpop.permute.xlu0 %190
  %vm192 = vcmp.lt.s32.totalorder %v27, 17
  %v193 = vsel %vm192, %v189, %v191
  %v194 = vsel %vm192, %v187, %v189
  %v195 = vsel %vm192, %v185, %v187
  %v196 = vsel %vm192, %v191, %v185
  %v197 = vmul.f32 %v196, %v63
  %v198 = vmul.f32 %v195, %v64
  %v199 = vmul.f32 %v194, %v65
  %v200 = vmul.f32 %v193, %v66
  %201 = vst [vmem:[#allocation2] sm:$0xff] %v197
  %202 = vst [vmem:[#allocation2 + $0x8] sm:$0xff] %v198
  %203 = vst [vmem:[#allocation2 + $0x10] sm:$0xff] %v199
  %204 = vst [vmem:[#allocation2 + $0x18] sm:$0xff] %v200
  %205 = vrot.lane.b32.xlu0 %v180, 16
  %v206 = vpop.permute.xlu0 %205
  %207 = vrot.lane.b32.xlu0 %v181, 16
  %v208 = vpop.permute.xlu0 %207
  %209 = vrot.lane.b32.xlu0 %v182, 16
  %v210 = vpop.permute.xlu0 %209
  %211 = vrot.lane.b32.xlu0 %v183, 16
  %v212 = vpop.permute.xlu0 %211
  %vm213 = vcmp.lt.s32.totalorder %v27, 16
  %v214 = vsel %vm213, %v210, %v212
  %v215 = vsel %vm213, %v208, %v210
  %v216 = vsel %vm213, %v206, %v208
  %v217 = vsel %vm213, %v212, %v206
  %v218 = vmul.f32 %v217, %v71
  %v219 = vmul.f32 %v216, %v72
  %v220 = vmul.f32 %v215, %v73
  %v221 = vmul.f32 %v214, %v74
  %222 = vst [vmem:[#allocation2 + $0x20] sm:$0xff] %v218
  %223 = vst [vmem:[#allocation2 + $0x28] sm:$0xff] %v219
  %224 = vst [vmem:[#allocation2 + $0x30] sm:$0xff] %v220
  %225 = vst [vmem:[#allocation2 + $0x38] sm:$0xff] %v221
  %226 = vrot.lane.b32.xlu0 %v180, 15
  %v227 = vpop.permute.xlu0 %226
  %228 = vrot.lane.b32.xlu0 %v181, 15
  %v229 = vpop.permute.xlu0 %228
  %230 = vrot.lane.b32.xlu0 %v182, 15
  %v231 = vpop.permute.xlu0 %230
  %232 = vrot.lane.b32.xlu0 %v183, 15
  %v233 = vpop.permute.xlu0 %232
  %vm234 = vcmp.lt.s32.totalorder %v27, 15
  %v235 = vsel %vm234, %v231, %v233
  %v236 = vsel %vm234, %v229, %v231
  %v237 = vsel %vm234, %v227, %v229
  %v238 = vsel %vm234, %v233, %v227
  %v239 = vmul.f32 %v238, %v83
  %v240 = vmul.f32 %v237, %v84
  %v241 = vmul.f32 %v236, %v85
  %v242 = vmul.f32 %v235, %v86
  %243 = vst [vmem:[#allocation2 + $0x40] sm:$0xff] %v239
  %244 = vst [vmem:[#allocation2 + $0x48] sm:$0xff] %v240
  %245 = vst [vmem:[#allocation2 + $0x50] sm:$0xff] %v241
  %246 = vst [vmem:[#allocation2 + $0x58] sm:$0xff] %v242
  %247 = vrot.lane.b32.xlu0 %v180, 1
  %v248 = vpop.permute.xlu0 %247
  %249 = vrot.lane.b32.xlu0 %v181, 1
  %v250 = vpop.permute.xlu0 %249
  %251 = vrot.lane.b32.xlu0 %v182, 1
  %v252 = vpop.permute.xlu0 %251
  %253 = vrot.lane.b32.xlu0 %v183, 1
  %v254 = vpop.permute.xlu0 %253
  %vm255 = vcmp.lt.s32.totalorder %v27, 1
  %v256 = vsel %vm255, %v252, %v254
  %v257 = vsel %vm255, %v250, %v252
  %v258 = vsel %vm255, %v248, %v250
  %v259 = vsel %vm255, %v254, %v248
  %v260 = vmul.f32 %v259, %v91
  %v261 = vmul.f32 %v258, %v92
  %v262 = vmul.f32 %v257, %v93
  %v263 = vmul.f32 %v256, %v94
  %264 = vst [vmem:[#allocation2 + $0x60] sm:$0xff] %v260
  %265 = vst [vmem:[#allocation2 + $0x68] sm:$0xff] %v261
  %266 = vst [vmem:[#allocation2 + $0x70] sm:$0xff] %v262
  %267 = vst [vmem:[#allocation2 + $0x78] sm:$0xff] %v263
  %268 = vst [vmem:[#allocation2 + $0x80] sm:$0xff] %v180
  %269 = vst [vmem:[#allocation2 + $0x88] sm:$0xff] %v181
  %270 = vst [vmem:[#allocation2 + $0x90] sm:$0xff] %v182
  %271 = vst [vmem:[#allocation2 + $0x98] sm:$0xff] %v183
  %272 = vrot.lane.b32.xlu0 %v180, 127
  %v273 = vpop.permute.xlu0 %272
  %274 = vrot.lane.b32.xlu0 %v181, 127
  %v275 = vpop.permute.xlu0 %274
  %276 = vrot.lane.b32.xlu0 %v182, 127
  %v277 = vpop.permute.xlu0 %276
  %278 = vrot.lane.b32.xlu0 %v183, 127
  %v279 = vpop.permute.xlu0 %278
  %vm280 = vcmp.lt.s32.totalorder %v27, 127
  %v281 = vsel %vm280, %v277, %v279
  %v282 = vsel %vm280, %v275, %v277
  %v283 = vsel %vm280, %v273, %v275
  %v284 = vsel %vm280, %v279, %v273
  %v285 = vmul.f32 %v283, %v99
  %v286 = vmul.f32 %v282, %v100
  %v287 = vmul.f32 %v281, %v101
  %v288 = vmul.f32 %v284, %v102
  %289 = vst [vmem:[#allocation2 + $0xa0] sm:$0xff] %v285
  %290 = vst [vmem:[#allocation2 + $0xa8] sm:$0xff] %v286
  %291 = vst [vmem:[#allocation2 + $0xb0] sm:$0xff] %v287
  %292 = vst [vmem:[#allocation2 + $0xb8] sm:$0xff] %v288
  %293 = vrot.lane.b32.xlu0 %v180, 113
  %v294 = vpop.permute.xlu0 %293
  %295 = vrot.lane.b32.xlu0 %v181, 113
  %v296 = vpop.permute.xlu0 %295
  %297 = vrot.lane.b32.xlu0 %v182, 113
  %v298 = vpop.permute.xlu0 %297
  %299 = vrot.lane.b32.xlu0 %v183, 113
  %v300 = vpop.permute.xlu0 %299
  %vm301 = vcmp.lt.s32.totalorder %v27, 113
  %v302 = vsel %vm301, %v298, %v300
  %v303 = vsel %vm301, %v296, %v298
  %v304 = vsel %vm301, %v294, %v296
  %v305 = vsel %vm301, %v300, %v294
  %v306 = vmul.f32 %v304, %v111
  %v307 = vmul.f32 %v303, %v112
  %v308 = vmul.f32 %v302, %v113
  %v309 = vmul.f32 %v305, %v114
  %310 = vst [vmem:[#allocation2 + $0xc0] sm:$0xff] %v306
  %311 = vst [vmem:[#allocation2 + $0xc8] sm:$0xff] %v307
  %312 = vst [vmem:[#allocation2 + $0xd0] sm:$0xff] %v308
  %313 = vst [vmem:[#allocation2 + $0xd8] sm:$0xff] %v309
  %314 = vrot.lane.b32.xlu0 %v180, 112
  %v315 = vpop.permute.xlu0 %314
  %316 = vrot.lane.b32.xlu0 %v181, 112
  %v317 = vpop.permute.xlu0 %316
  %318 = vrot.lane.b32.xlu0 %v182, 112
  %v319 = vpop.permute.xlu0 %318
  %320 = vrot.lane.b32.xlu0 %v183, 112
  %v321 = vpop.permute.xlu0 %320
  %vm322 = vcmp.lt.s32.totalorder %v27, 112
  %v323 = vsel %vm322, %v319, %v321
  %v324 = vsel %vm322, %v317, %v319
  %v325 = vsel %vm322, %v315, %v317
  %v326 = vsel %vm322, %v321, %v315
  %v327 = vmul.f32 %v325, %v119
  %v328 = vmul.f32 %v324, %v120
  %v329 = vmul.f32 %v323, %v121
  %v330 = vmul.f32 %v326, %v122
  %331 = vst [vmem:[#allocation2 + $0xe0] sm:$0xff] %v327
  %332 = vst [vmem:[#allocation2 + $0xe8] sm:$0xff] %v328
  %333 = vst [vmem:[#allocation2 + $0xf0] sm:$0xff] %v329
  %334 = vst [vmem:[#allocation2 + $0xf8] sm:$0xff] %v330
  %335 = vrot.lane.b32.xlu0 %v180, 111
  %v336 = vpop.permute.xlu0 %335
  %337 = vrot.lane.b32.xlu0 %v181, 111
  %v338 = vpop.permute.xlu0 %337
  %339 = vrot.lane.b32.xlu0 %v182, 111
  %v340 = vpop.permute.xlu0 %339
  %341 = vrot.lane.b32.xlu0 %v183, 111
  %v342 = vpop.permute.xlu0 %341
  %vm343 = vcmp.lt.s32.totalorder %v27, 111
  %v344 = vsel %vm343, %v340, %v342
  %v345 = vsel %vm343, %v338, %v340
  %v346 = vsel %vm343, %v336, %v338
  %v347 = vsel %vm343, %v342, %v336
  %v348 = vmul.f32 %v346, %v131
  %v349 = vmul.f32 %v345, %v132
  %v350 = vmul.f32 %v344, %v133
  %v351 = vmul.f32 %v347, %v134
  %352 = vst [vmem:[#allocation2 + $0x100] sm:$0xff] %v348
  %353 = vst [vmem:[#allocation2 + $0x108] sm:$0xff] %v349
  %354 = vst [vmem:[#allocation2 + $0x110] sm:$0xff] %v350
  %355 = vst [vmem:[#allocation2 + $0x118] sm:$0xff] %v351
  %v356 = vld [vmem:[%s1] sm:$0xff]
  %v357 = vld [vmem:[#allocation2] sm:$0xff]
  %v358 = vld [vmem:[#allocation2 + $0x8] sm:$0xff]
  %v359 = vld [vmem:[#allocation2 + $0x10] sm:$0xff]
  %v360 = vld [vmem:[#allocation2 + $0x18] sm:$0xff]
  %v361 = vld [vmem:[#allocation2 + $0x20] sm:$0xff]
  %v362 = vld [vmem:[#allocation2 + $0x28] sm:$0xff]
  %v363 = vld [vmem:[#allocation2 + $0x30] sm:$0xff]
  %v364 = vld [vmem:[#allocation2 + $0x38] sm:$0xff]
  %v365 = vld [vmem:[#allocation2 + $0x40] sm:$0xff]
  %v366 = vld [vmem:[#allocation2 + $0x48] sm:$0xff]
  %v367 = vld [vmem:[#allocation2 + $0x50] sm:$0xff]
  %v368 = vld [vmem:[#allocation2 + $0x58] sm:$0xff]
  %v369 = vld [vmem:[#allocation2 + $0x60] sm:$0xff]
  %v370 = vld [vmem:[#allocation2 + $0x68] sm:$0xff]
  %v371 = vld [vmem:[#allocation2 + $0x70] sm:$0xff]
  %v372 = vld [vmem:[#allocation2 + $0x78] sm:$0xff]
  %v373 = vld [vmem:[#allocation2 + $0x80] sm:$0xff]
  %v374 = vld [vmem:[#allocation2 + $0x88] sm:$0xff]
  %v375 = vld [vmem:[#allocation2 + $0x90] sm:$0xff]
  %v376 = vld [vmem:[#allocation2 + $0x98] sm:$0xff]
  %v377 = vld [vmem:[#allocation2 + $0xa0] sm:$0xff]
  %v378 = vld [vmem:[#allocation2 + $0xa8] sm:$0xff]
  %v379 = vld [vmem:[#allocation2 + $0xb0] sm:$0xff]
  %v380 = vld [vmem:[#allocation2 + $0xb8] sm:$0xff]
  %v381 = vld [vmem:[#allocation2 + $0xc0] sm:$0xff]
  %v382 = vld [vmem:[#allocation2 + $0xc8] sm:$0xff]
  %v383 = vld [vmem:[#allocation2 + $0xd0] sm:$0xff]
  %v384 = vld [vmem:[#allocation2 + $0xd8] sm:$0xff]
  %v385 = vld [vmem:[#allocation2 + $0xe0] sm:$0xff]
  %v386 = vld [vmem:[#allocation2 + $0xe8] sm:$0xff]
  %v387 = vld [vmem:[#allocation2 + $0xf0] sm:$0xff]
  %v388 = vld [vmem:[#allocation2 + $0xf8] sm:$0xff]
  %v389 = vld [vmem:[#allocation2 + $0x100] sm:$0xff]
  %v390 = vld [vmem:[#allocation2 + $0x108] sm:$0xff]
  %v391 = vld [vmem:[#allocation2 + $0x110] sm:$0xff]
  %v392 = vld [vmem:[#allocation2 + $0x118] sm:$0xff]
  %v393 = vld [vmem:[#allocation2 + $0x120] sm:$0xff]
  %v394 = vld [vmem:[#allocation2 + $0x128] sm:$0xff]
  %v395 = vld [vmem:[#allocation2 + $0x130] sm:$0xff]
  %v396 = vld [vmem:[#allocation2 + $0x138] sm:$0xff]
  %vm397 = vcmask 654336
  %v399 = vsel %vm397, %v356, 0
  %401 = vmatprep.subr.mxu0 0.0
  %402 = vmatpush1.msra.mxu0 0.0
  %403 = vmatprep.subr.mxu0 0.0
  %404 = vmatpush1.msra.mxu0 0.0
  %405 = vmatprep.subr.mxu0 0.0
  %406 = vmatpush1.msra.mxu0 0.0
  %407 = vmatprep.subr.mxu0 0.0
  %408 = vmatpush1.msra.mxu0 0.0
  %409 = vmatprep.subr.mxu0 0.0
  %410 = vmatpush1.msra.mxu0 0.0
  %411 = vmatprep.subr.mxu0 0.0
  %412 = vmatpush1.msra.mxu0 0.0
  %413 = vmatprep.subr.mxu0 %v394
  %414 = vmatpush1.msra.mxu0 %v393
  %415 = vmatprep.subr.mxu0 %v390
  %416 = vmatpush1.msra.mxu0 %v389
  %417 = vmatprep.subr.mxu0 %v386
  %418 = vmatpush1.msra.mxu0 %v385
  %419 = vmatprep.subr.mxu0 %v382
  %420 = vmatpush1.msra.mxu0 %v381
  %421 = vmatprep.subr.mxu0 %v378
  %422 = vmatpush1.msra.mxu0 %v377
  %423 = vmatprep.subr.mxu0 %v374
  %424 = vmatpush1.msra.mxu0 %v373
  %425 = vmatprep.subr.mxu0 %v370
  %426 = vmatpush1.msra.mxu0 %v369
  %427 = vmatprep.subr.mxu0 %v366
  %428 = vmatpush1.msra.mxu0 %v365
  %429 = vmatprep.subr.mxu0 %v362
  %430 = vmatpush1.msra.mxu0 %v361
  %431 = vmatprep.subr.mxu0 %v358
  %432 = vmatpush1.msra.mxu0 %v357
  %433 = vmatprep.subr.mxu0 0.0
  %434 = vmatpush2.msra.mxu0 0.0
  %435 = vmatprep.subr.mxu0 0.0
  %436 = vmatpush2.msra.mxu0 0.0
  %437 = vmatprep.subr.mxu0 0.0
  %438 = vmatpush2.msra.mxu0 0.0
  %439 = vmatprep.subr.mxu0 0.0
  %440 = vmatpush2.msra.mxu0 0.0
  %441 = vmatprep.subr.mxu0 0.0
  %442 = vmatpush2.msra.mxu0 0.0
  %443 = vmatprep.subr.mxu0 0.0
  %444 = vmatpush2.msra.mxu0 0.0
  %445 = vmatprep.subr.mxu0 0.0
  %446 = vmatpush2.msra.mxu0 0.0
  %447 = vmatprep.subr.mxu0 0.0
  %448 = vmatpush2.msra.mxu0 0.0
  %449 = vmatprep.subr.mxu0 0.0
  %450 = vmatpush2.msra.mxu0 0.0
  %451 = vmatprep.subr.mxu0 0.0
  %452 = vmatpush2.msra.mxu0 0.0
  %453 = vmatprep.subr.mxu0 0.0
  %454 = vmatpush2.msra.mxu0 0.0
  %455 = vmatprep.subr.mxu0 0.0
  %456 = vmatpush2.msra.mxu0 0.0
  %457 = vmatprep.subr.mxu0 0.0
  %458 = vmatpush2.msra.mxu0 0.0
  %459 = vmatprep.subr.mxu0 0.0
  %460 = vmatpush2.msra.mxu0 0.0
  %461 = vmatprep.subr.mxu0 0.0
  %462 = vmatpush2.msra.mxu0 0.0
  %463 = vmatprep.subr.mxu0 0.0
  %464 = vmatpush2.msra.mxu0 0.0
  %465 = vmatprep.mubr.f32.mxu0 0.0
  %466 = vmatmul.mubr.f32.gmra.mxu0 %v399
  %v467 = vpop.f32.mrf.mxu0
  %v468 = vadd.f32 0.0, %v467
  %v469 = vpop.f32.mrf.mxu0
  %v470 = vadd.f32 0.0, %v469
  %471 = vdwg.mxu0
  %472 = vmatprep.subr.mxu0 0.0
  %473 = vmatpush1.msra.mxu0 0.0
  %474 = vmatprep.subr.mxu0 0.0
  %475 = vmatpush1.msra.mxu0 0.0
  %476 = vmatprep.subr.mxu0 0.0
  %477 = vmatpush1.msra.mxu0 0.0
  %478 = vmatprep.subr.mxu0 0.0
  %479 = vmatpush1.msra.mxu0 0.0
  %480 = vmatprep.subr.mxu0 0.0
  %481 = vmatpush1.msra.mxu0 0.0
  %482 = vmatprep.subr.mxu0 0.0
  %483 = vmatpush1.msra.mxu0 0.0
  %484 = vmatprep.subr.mxu0 %v396
  %485 = vmatpush1.msra.mxu0 %v395
  %486 = vmatprep.subr.mxu0 %v392
  %487 = vmatpush1.msra.mxu0 %v391
  %488 = vmatprep.subr.mxu0 %v388
  %489 = vmatpush1.msra.mxu0 %v387
  %490 = vmatprep.subr.mxu0 %v384
  %491 = vmatpush1.msra.mxu0 %v383
  %492 = vmatprep.subr.mxu0 %v380
  %493 = vmatpush1.msra.mxu0 %v379
  %494 = vmatprep.subr.mxu0 %v376
  %495 = vmatpush1.msra.mxu0 %v375
  %496 = vmatprep.subr.mxu0 %v372
  %497 = vmatpush1.msra.mxu0 %v371
  %498 = vmatprep.subr.mxu0 %v368
  %499 = vmatpush1.msra.mxu0 %v367
  %500 = vmatprep.subr.mxu0 %v364
  %501 = vmatpush1.msra.mxu0 %v363
  %502 = vmatprep.subr.mxu0 %v360
  %503 = vmatpush1.msra.mxu0 %v359
  %504 = vmatprep.subr.mxu0 0.0
  %505 = vmatpush2.msra.mxu0 0.0
  %506 = vmatprep.subr.mxu0 0.0
  %507 = vmatpush2.msra.mxu0 0.0
  %508 = vmatprep.subr.mxu0 0.0
  %509 = vmatpush2.msra.mxu0 0.0
  %510 = vmatprep.subr.mxu0 0.0
  %511 = vmatpush2.msra.mxu0 0.0
  %512 = vmatprep.subr.mxu0 0.0
  %513 = vmatpush2.msra.mxu0 0.0
  %514 = vmatprep.subr.mxu0 0.0
  %515 = vmatpush2.msra.mxu0 0.0
  %516 = vmatprep.subr.mxu0 0.0
  %517 = vmatpush2.msra.mxu0 0.0
  %518 = vmatprep.subr.mxu0 0.0
  %519 = vmatpush2.msra.mxu0 0.0
  %520 = vmatprep.subr.mxu0 0.0
  %521 = vmatpush2.msra.mxu0 0.0
  %522 = vmatprep.subr.mxu0 0.0
  %523 = vmatpush2.msra.mxu0 0.0
  %524 = vmatprep.subr.mxu0 0.0
  %525 = vmatpush2.msra.mxu0 0.0
  %526 = vmatprep.subr.mxu0 0.0
  %527 = vmatpush2.msra.mxu0 0.0
  %528 = vmatprep.subr.mxu0 0.0
  %529 = vmatpush2.msra.mxu0 0.0
  %530 = vmatprep.subr.mxu0 0.0
  %531 = vmatpush2.msra.mxu0 0.0
  %532 = vmatprep.subr.mxu0 0.0
  %533 = vmatpush2.msra.mxu0 0.0
  %534 = vmatprep.subr.mxu0 0.0
  %535 = vmatpush2.msra.mxu0 0.0
  %536 = vmatprep.mubr.f32.mxu0 0.0
  %537 = vmatmul.mubr.f32.gmra.mxu0 %v399
  %v538 = vpop.f32.mrf.mxu0
  %v539 = vadd.f32 0.0, %v538
  %v540 = vpop.f32.mrf.mxu0
  %v541 = vadd.f32 0.0, %v540
  %542 = vdwg.mxu0
  %v543 = vadd.f32 %v468, %v470
  %v544 = vadd.f32 %v543, %v539
  %v545 = vadd.f32 %v544, %v541
  %546 = vadd.xlane.f32.xlu0 %v545
  %v547 = vpop.xlane.xlu0 %546
  %v548 = vmul.f32 %v468, %v468
  %v549 = vmul.f32 %v470, %v470
  %v550 = vmul.f32 %v539, %v539
  %v551 = vmul.f32 %v541, %v541
  %v552 = vadd.f32 %v548, %v549
  %v553 = vadd.f32 %v552, %v550
  %v554 = vadd.f32 %v553, %v551
  %555 = vadd.xlane.f32.xlu0 %v554
  %v556 = vpop.xlane.xlu0 %555
  %v557 = vmul.f32 %v547, 0.001953125
  %v558 = vmul.f32 %v556, 0.001953125
  %v559 = vmul.f32 %v557, %v557
  %v560 = vsub.f32 %v558, %v559
  %v561 = vadd.f32 %v560, 1e-05
  %v562 = vrsqrt.pop %v561
  %v563 = vmul.f32 %v21, %v562
  %v564 = vmul.f32 %v557, %v563
  %566 = vrot.lane.b32.xlu0 %v564, 1
  %v567 = vpop.permute.xlu0 %566
  %v569 = vsub.f32 %v21, %v567
  %571 = vset.pattern.permute.xlu0 2
  %572 = vperm.xlu0 %571, %v563
  %v573 = vpop.permute.xlu0 %572
  %v575 = vmul.f32 %v468, %v573
  %v576 = vmul.f32 %v470, %v573
  %v577 = vmul.f32 %v539, %v573
  %v578 = vmul.f32 %v541, %v573
  %580 = vset.pattern.permute.xlu0 3
  %581 = vperm.xlu0 %580, %v569
  %v582 = vpop.permute.xlu0 %581
  %v584 = vadd.f32 %v575, %v582
  %v585 = vadd.f32 %v576, %v582
  %v586 = vadd.f32 %v577, %v582
  %v587 = vadd.f32 %v578, %v582
  %v588 = vmax.f32 %v584, 0.0
  %v589 = vmax.f32 %v585, 0.0
  %v590 = vmax.f32 %v586, 0.0
  %v591 = vmax.f32 %v587, 0.0
  %592 = vrot.lane.b32.xlu0 %v588, 17
  %v593 = vpop.permute.xlu0 %592
  %594 = vrot.lane.b32.xlu0 %v589, 17
  %v595 = vpop.permute.xlu0 %594
  %596 = vrot.lane.b32.xlu0 %v590, 17
  %v597 = vpop.permute.xlu0 %596
  %598 = vrot.lane.b32.xlu0 %v591, 17
  %v599 = vpop.permute.xlu0 %598
  %v600 = vsel %vm192, %v597, %v599
  %v601 = vsel %vm192, %v595, %v597
  %v602 = vsel %vm192, %v593, %v595
  %v603 = vsel %vm192, %v599, %v593
  %v604 = vmul.f32 %v603, %v63
  %v605 = vmul.f32 %v602, %v64
  %v606 = vmul.f32 %v601, %v65
  %v607 = vmul.f32 %v600, %v66
  %608 = vst [vmem:[#allocation2] sm:$0xff] %v604
  %609 = vst [vmem:[#allocation2 + $0x8] sm:$0xff] %v605
  %610 = vst [vmem:[#allocation2 + $0x10] sm:$0xff] %v606
  %611 = vst [vmem:[#allocation2 + $0x18] sm:$0xff] %v607
  %612 = vrot.lane.b32.xlu0 %v588, 16
  %v613 = vpop.permute.xlu0 %612
  %614 = vrot.lane.b32.xlu0 %v589, 16
  %v615 = vpop.permute.xlu0 %614
  %616 = vrot.lane.b32.xlu0 %v590, 16
  %v617 = vpop.permute.xlu0 %616
  %618 = vrot.lane.b32.xlu0 %v591, 16
  %v619 = vpop.permute.xlu0 %618
  %v620 = vsel %vm213, %v617, %v619
  %v621 = vsel %vm213, %v615, %v617
  %v622 = vsel %vm213, %v613, %v615
  %v623 = vsel %vm213, %v619, %v613
  %v624 = vmul.f32 %v623, %v71
  %v625 = vmul.f32 %v622, %v72
  %v626 = vmul.f32 %v621, %v73
  %v627 = vmul.f32 %v620, %v74
  %628 = vst [vmem:[#allocation2 + $0x20] sm:$0xff] %v624
  %629 = vst [vmem:[#allocation2 + $0x28] sm:$0xff] %v625
  %630 = vst [vmem:[#allocation2 + $0x30] sm:$0xff] %v626
  %631 = vst [vmem:[#allocation2 + $0x38] sm:$0xff] %v627
  %632 = vrot.lane.b32.xlu0 %v588, 15
  %v633 = vpop.permute.xlu0 %632
  %634 = vrot.lane.b32.xlu0 %v589, 15
  %v635 = vpop.permute.xlu0 %634
  %636 = vrot.lane.b32.xlu0 %v590, 15
  %v637 = vpop.permute.xlu0 %636
  %638 = vrot.lane.b32.xlu0 %v591, 15
  %v639 = vpop.permute.xlu0 %638
  %v640 = vsel %vm234, %v637, %v639
  %v641 = vsel %vm234, %v635, %v637
  %v642 = vsel %vm234, %v633, %v635
  %v643 = vsel %vm234, %v639, %v633
  %v644 = vmul.f32 %v643, %v83
  %v645 = vmul.f32 %v642, %v84
  %v646 = vmul.f32 %v641, %v85
  %v647 = vmul.f32 %v640, %v86
  %648 = vst [vmem:[#allocation2 + $0x40] sm:$0xff] %v644
  %649 = vst [vmem:[#allocation2 + $0x48] sm:$0xff] %v645
  %650 = vst [vmem:[#allocation2 + $0x50] sm:$0xff] %v646
  %651 = vst [vmem:[#allocation2 + $0x58] sm:$0xff] %v647
  %652 = vrot.lane.b32.xlu0 %v588, 1
  %v653 = vpop.permute.xlu0 %652
  %654 = vrot.lane.b32.xlu0 %v589, 1
  %v655 = vpop.permute.xlu0 %654
  %656 = vrot.lane.b32.xlu0 %v590, 1
  %v657 = vpop.permute.xlu0 %656
  %658 = vrot.lane.b32.xlu0 %v591, 1
  %v659 = vpop.permute.xlu0 %658
  %v660 = vsel %vm255, %v657, %v659
  %v661 = vsel %vm255, %v655, %v657
  %v662 = vsel %vm255, %v653, %v655
  %v663 = vsel %vm255, %v659, %v653
  %v664 = vmul.f32 %v663, %v91
  %v665 = vmul.f32 %v662, %v92
  %v666 = vmul.f32 %v661, %v93
  %v667 = vmul.f32 %v660, %v94
  %668 = vst [vmem:[#allocation2 + $0x60] sm:$0xff] %v664
  %669 = vst [vmem:[#allocation2 + $0x68] sm:$0xff] %v665
  %670 = vst [vmem:[#allocation2 + $0x70] sm:$0xff] %v666
  %671 = vst [vmem:[#allocation2 + $0x78] sm:$0xff] %v667
  %672 = vst [vmem:[#allocation2 + $0x80] sm:$0xff] %v588
  %673 = vst [vmem:[#allocation2 + $0x88] sm:$0xff] %v589
  %674 = vst [vmem:[#allocation2 + $0x90] sm:$0xff] %v590
  %675 = vst [vmem:[#allocation2 + $0x98] sm:$0xff] %v591
  %676 = vrot.lane.b32.xlu0 %v588, 127
  %v677 = vpop.permute.xlu0 %676
  %678 = vrot.lane.b32.xlu0 %v589, 127
  %v679 = vpop.permute.xlu0 %678
  %680 = vrot.lane.b32.xlu0 %v590, 127
  %v681 = vpop.permute.xlu0 %680
  %682 = vrot.lane.b32.xlu0 %v591, 127
  %v683 = vpop.permute.xlu0 %682
  %v684 = vsel %vm280, %v681, %v683
  %v685 = vsel %vm280, %v679, %v681
  %v686 = vsel %vm280, %v677, %v679
  %v687 = vsel %vm280, %v683, %v677
  %v688 = vmul.f32 %v686, %v99
  %v689 = vmul.f32 %v685, %v100
  %v690 = vmul.f32 %v684, %v101
  %v691 = vmul.f32 %v687, %v102
  %692 = vst [vmem:[#allocation2 + $0xa0] sm:$0xff] %v688
  %693 = vst [vmem:[#allocation2 + $0xa8] sm:$0xff] %v689
  %694 = vst [vmem:[#allocation2 + $0xb0] sm:$0xff] %v690
  %695 = vst [vmem:[#allocation2 + $0xb8] sm:$0xff] %v691
  %696 = vrot.lane.b32.xlu0 %v588, 113
  %v697 = vpop.permute.xlu0 %696
  %698 = vrot.lane.b32.xlu0 %v589, 113
  %v699 = vpop.permute.xlu0 %698
  %700 = vrot.lane.b32.xlu0 %v590, 113
  %v701 = vpop.permute.xlu0 %700
  %702 = vrot.lane.b32.xlu0 %v591, 113
  %v703 = vpop.permute.xlu0 %702
  %v704 = vsel %vm301, %v701, %v703
  %v705 = vsel %vm301, %v699, %v701
  %v706 = vsel %vm301, %v697, %v699
  %v707 = vsel %vm301, %v703, %v697
  %v708 = vmul.f32 %v706, %v111
  %v709 = vmul.f32 %v705, %v112
  %v710 = vmul.f32 %v704, %v113
  %v711 = vmul.f32 %v707, %v114
  %712 = vst [vmem:[#allocation2 + $0xc0] sm:$0xff] %v708
  %713 = vst [vmem:[#allocation2 + $0xc8] sm:$0xff] %v709
  %714 = vst [vmem:[#allocation2 + $0xd0] sm:$0xff] %v710
  %715 = vst [vmem:[#allocation2 + $0xd8] sm:$0xff] %v711
  %716 = vrot.lane.b32.xlu0 %v588, 112
  %v717 = vpop.permute.xlu0 %716
  %718 = vrot.lane.b32.xlu0 %v589, 112
  %v719 = vpop.permute.xlu0 %718
  %720 = vrot.lane.b32.xlu0 %v590, 112
  %v721 = vpop.permute.xlu0 %720
  %722 = vrot.lane.b32.xlu0 %v591, 112
  %v723 = vpop.permute.xlu0 %722
  %v724 = vsel %vm322, %v721, %v723
  %v725 = vsel %vm322, %v719, %v721
  %v726 = vsel %vm322, %v717, %v719
  %v727 = vsel %vm322, %v723, %v717
  %v728 = vmul.f32 %v726, %v119
  %v729 = vmul.f32 %v725, %v120
  %v730 = vmul.f32 %v724, %v121
  %v731 = vmul.f32 %v727, %v122
  %732 = vst [vmem:[#allocation2 + $0xe0] sm:$0xff] %v728
  %733 = vst [vmem:[#allocation2 + $0xe8] sm:$0xff] %v729
  %734 = vst [vmem:[#allocation2 + $0xf0] sm:$0xff] %v730
  %735 = vst [vmem:[#allocation2 + $0xf8] sm:$0xff] %v731
  %736 = vrot.lane.b32.xlu0 %v588, 111
  %v737 = vpop.permute.xlu0 %736
  %738 = vrot.lane.b32.xlu0 %v589, 111
  %v739 = vpop.permute.xlu0 %738
  %740 = vrot.lane.b32.xlu0 %v590, 111
  %v741 = vpop.permute.xlu0 %740
  %742 = vrot.lane.b32.xlu0 %v591, 111
  %v743 = vpop.permute.xlu0 %742
  %v744 = vsel %vm343, %v741, %v743
  %v745 = vsel %vm343, %v739, %v741
  %v746 = vsel %vm343, %v737, %v739
  %v747 = vsel %vm343, %v743, %v737
  %v748 = vmul.f32 %v746, %v131
  %v749 = vmul.f32 %v745, %v132
  %v750 = vmul.f32 %v744, %v133
  %v751 = vmul.f32 %v747, %v134
  %752 = vst [vmem:[#allocation2 + $0x100] sm:$0xff] %v748
  %753 = vst [vmem:[#allocation2 + $0x108] sm:$0xff] %v749
  %754 = vst [vmem:[#allocation2 + $0x110] sm:$0xff] %v750
  %755 = vst [vmem:[#allocation2 + $0x118] sm:$0xff] %v751
  %v756 = vld [vmem:[%s2] sm:$0xff]
  %v757 = vld [vmem:[#allocation2] sm:$0xff]
  %v758 = vld [vmem:[#allocation2 + $0x8] sm:$0xff]
  %v759 = vld [vmem:[#allocation2 + $0x10] sm:$0xff]
  %v760 = vld [vmem:[#allocation2 + $0x18] sm:$0xff]
  %v761 = vld [vmem:[#allocation2 + $0x20] sm:$0xff]
  %v762 = vld [vmem:[#allocation2 + $0x28] sm:$0xff]
  %v763 = vld [vmem:[#allocation2 + $0x30] sm:$0xff]
  %v764 = vld [vmem:[#allocation2 + $0x38] sm:$0xff]
  %v765 = vld [vmem:[#allocation2 + $0x40] sm:$0xff]
  %v766 = vld [vmem:[#allocation2 + $0x48] sm:$0xff]
  %v767 = vld [vmem:[#allocation2 + $0x50] sm:$0xff]
  %v768 = vld [vmem:[#allocation2 + $0x58] sm:$0xff]
  %v769 = vld [vmem:[#allocation2 + $0x60] sm:$0xff]
  %v770 = vld [vmem:[#allocation2 + $0x68] sm:$0xff]
  %v771 = vld [vmem:[#allocation2 + $0x70] sm:$0xff]
  %v772 = vld [vmem:[#allocation2 + $0x78] sm:$0xff]
  %v773 = vld [vmem:[#allocation2 + $0x80] sm:$0xff]
  %v774 = vld [vmem:[#allocation2 + $0x88] sm:$0xff]
  %v775 = vld [vmem:[#allocation2 + $0x90] sm:$0xff]
  %v776 = vld [vmem:[#allocation2 + $0x98] sm:$0xff]
  %v777 = vld [vmem:[#allocation2 + $0xa0] sm:$0xff]
  %v778 = vld [vmem:[#allocation2 + $0xa8] sm:$0xff]
  %v779 = vld [vmem:[#allocation2 + $0xb0] sm:$0xff]
  %v780 = vld [vmem:[#allocation2 + $0xb8] sm:$0xff]
  %v781 = vld [vmem:[#allocation2 + $0xc0] sm:$0xff]
  %v782 = vld [vmem:[#allocation2 + $0xc8] sm:$0xff]
  %v783 = vld [vmem:[#allocation2 + $0xd0] sm:$0xff]
  %v784 = vld [vmem:[#allocation2 + $0xd8] sm:$0xff]
  %v785 = vld [vmem:[#allocation2 + $0xe0] sm:$0xff]
  %v786 = vld [vmem:[#allocation2 + $0xe8] sm:$0xff]
  %v787 = vld [vmem:[#allocation2 + $0xf0] sm:$0xff]
  %v788 = vld [vmem:[#allocation2 + $0xf8] sm:$0xff]
  %v789 = vld [vmem:[#allocation2 + $0x100] sm:$0xff]
  %v790 = vld [vmem:[#allocation2 + $0x108] sm:$0xff]
  %v791 = vld [vmem:[#allocation2 + $0x110] sm:$0xff]
  %v792 = vld [vmem:[#allocation2 + $0x118] sm:$0xff]
  %v793 = vld [vmem:[#allocation2 + $0x120] sm:$0xff]
  %v794 = vld [vmem:[#allocation2 + $0x128] sm:$0xff]
  %v795 = vld [vmem:[#allocation2 + $0x130] sm:$0xff]
  %v796 = vld [vmem:[#allocation2 + $0x138] sm:$0xff]
  %798 = vset.pattern.permute.xlu0 4
  %799 = vperm.xlu0 %798, %v21
  %v800 = vpop.permute.xlu0 %799
  %v803 = vsel %vm397, %v756, 0
  %805 = vmatprep.subr.mxu0 0.0
  %806 = vmatpush1.msra.mxu0 0.0
  %807 = vmatprep.subr.mxu0 0.0
  %808 = vmatpush1.msra.mxu0 0.0
  %809 = vmatprep.subr.mxu0 0.0
  %810 = vmatpush1.msra.mxu0 0.0
  %811 = vmatprep.subr.mxu0 0.0
  %812 = vmatpush1.msra.mxu0 0.0
  %813 = vmatprep.subr.mxu0 0.0
  %814 = vmatpush1.msra.mxu0 0.0
  %815 = vmatprep.subr.mxu0 0.0
  %816 = vmatpush1.msra.mxu0 0.0
  %817 = vmatprep.subr.mxu0 %v794
  %818 = vmatpush1.msra.mxu0 %v793
  %819 = vmatprep.subr.mxu0 %v790
  %820 = vmatpush1.msra.mxu0 %v789
  %821 = vmatprep.subr.mxu0 %v786
  %822 = vmatpush1.msra.mxu0 %v785
  %823 = vmatprep.subr.mxu0 %v782
  %824 = vmatpush1.msra.mxu0 %v781
  %825 = vmatprep.subr.mxu0 %v778
  %826 = vmatpush1.msra.mxu0 %v777
  %827 = vmatprep.subr.mxu0 %v774
  %828 = vmatpush1.msra.mxu0 %v773
  %829 = vmatprep.subr.mxu0 %v770
  %830 = vmatpush1.msra.mxu0 %v769
  %831 = vmatprep.subr.mxu0 %v766
  %832 = vmatpush1.msra.mxu0 %v765
  %833 = vmatprep.subr.mxu0 %v762
  %834 = vmatpush1.msra.mxu0 %v761
  %835 = vmatprep.subr.mxu0 %v758
  %836 = vmatpush1.msra.mxu0 %v757
  %837 = vmatprep.subr.mxu0 0.0
  %838 = vmatpush2.msra.mxu0 0.0
  %839 = vmatprep.subr.mxu0 0.0
  %840 = vmatpush2.msra.mxu0 0.0
  %841 = vmatprep.subr.mxu0 0.0
  %842 = vmatpush2.msra.mxu0 0.0
  %843 = vmatprep.subr.mxu0 0.0
  %844 = vmatpush2.msra.mxu0 0.0
  %845 = vmatprep.subr.mxu0 0.0
  %846 = vmatpush2.msra.mxu0 0.0
  %847 = vmatprep.subr.mxu0 0.0
  %848 = vmatpush2.msra.mxu0 0.0
  %849 = vmatprep.subr.mxu0 0.0
  %850 = vmatpush2.msra.mxu0 0.0
  %851 = vmatprep.subr.mxu0 0.0
  %852 = vmatpush2.msra.mxu0 0.0
  %853 = vmatprep.subr.mxu0 0.0
  %854 = vmatpush2.msra.mxu0 0.0
  %855 = vmatprep.subr.mxu0 0.0
  %856 = vmatpush2.msra.mxu0 0.0
  %857 = vmatprep.subr.mxu0 0.0
  %858 = vmatpush2.msra.mxu0 0.0
  %859 = vmatprep.subr.mxu0 0.0
  %860 = vmatpush2.msra.mxu0 0.0
  %861 = vmatprep.subr.mxu0 0.0
  %862 = vmatpush2.msra.mxu0 0.0
  %863 = vmatprep.subr.mxu0 0.0
  %864 = vmatpush2.msra.mxu0 0.0
  %865 = vmatprep.subr.mxu0 0.0
  %866 = vmatpush2.msra.mxu0 0.0
  %867 = vmatprep.subr.mxu0 0.0
  %868 = vmatpush2.msra.mxu0 0.0
  %869 = vmatprep.mubr.f32.mxu0 0.0
  %870 = vmatmul.mubr.f32.gmra.mxu0 %v803
  %v871 = vpop.f32.mrf.mxu0
  %v872 = vadd.f32 %v800, %v871
  %v873 = vpop.f32.mrf.mxu0
  %v874 = vadd.f32 %v800, %v873
  %875 = vdwg.mxu0
  %876 = vmatprep.subr.mxu0 0.0
  %877 = vmatpush1.msra.mxu0 0.0
  %878 = vmatprep.subr.mxu0 0.0
  %879 = vmatpush1.msra.mxu0 0.0
  %880 = vmatprep.subr.mxu0 0.0
  %881 = vmatpush1.msra.mxu0 0.0
  %882 = vmatprep.subr.mxu0 0.0
  %883 = vmatpush1.msra.mxu0 0.0
  %884 = vmatprep.subr.mxu0 0.0
  %885 = vmatpush1.msra.mxu0 0.0
  %886 = vmatprep.subr.mxu0 0.0
  %887 = vmatpush1.msra.mxu0 0.0
  %888 = vmatprep.subr.mxu0 %v796
  %889 = vmatpush1.msra.mxu0 %v795
  %890 = vmatprep.subr.mxu0 %v792
  %891 = vmatpush1.msra.mxu0 %v791
  %892 = vmatprep.subr.mxu0 %v788
  %893 = vmatpush1.msra.mxu0 %v787
  %894 = vmatprep.subr.mxu0 %v784
  %895 = vmatpush1.msra.mxu0 %v783
  %896 = vmatprep.subr.mxu0 %v780
  %897 = vmatpush1.msra.mxu0 %v779
  %898 = vmatprep.subr.mxu0 %v776
  %899 = vmatpush1.msra.mxu0 %v775
  %900 = vmatprep.subr.mxu0 %v772
  %901 = vmatpush1.msra.mxu0 %v771
  %902 = vmatprep.subr.mxu0 %v768
  %903 = vmatpush1.msra.mxu0 %v767
  %904 = vmatprep.subr.mxu0 %v764
  %905 = vmatpush1.msra.mxu0 %v763
  %906 = vmatprep.subr.mxu0 %v760
  %907 = vmatpush1.msra.mxu0 %v759
  %908 = vmatprep.subr.mxu0 0.0
  %909 = vmatpush2.msra.mxu0 0.0
  %910 = vmatprep.subr.mxu0 0.0
  %911 = vmatpush2.msra.mxu0 0.0
  %912 = vmatprep.subr.mxu0 0.0
  %913 = vmatpush2.msra.mxu0 0.0
  %914 = vmatprep.subr.mxu0 0.0
  %915 = vmatpush2.msra.mxu0 0.0
  %916 = vmatprep.subr.mxu0 0.0
  %917 = vmatpush2.msra.mxu0 0.0
  %918 = vmatprep.subr.mxu0 0.0
  %919 = vmatpush2.msra.mxu0 0.0
  %920 = vmatprep.subr.mxu0 0.0
  %921 = vmatpush2.msra.mxu0 0.0
  %922 = vmatprep.subr.mxu0 0.0
  %923 = vmatpush2.msra.mxu0 0.0
  %924 = vmatprep.subr.mxu0 0.0
  %925 = vmatpush2.msra.mxu0 0.0
  %926 = vmatprep.subr.mxu0 0.0
  %927 = vmatpush2.msra.mxu0 0.0
  %928 = vmatprep.subr.mxu0 0.0
  %929 = vmatpush2.msra.mxu0 0.0
  %930 = vmatprep.subr.mxu0 0.0
  %931 = vmatpush2.msra.mxu0 0.0
  %932 = vmatprep.subr.mxu0 0.0
  %933 = vmatpush2.msra.mxu0 0.0
  %934 = vmatprep.subr.mxu0 0.0
  %935 = vmatpush2.msra.mxu0 0.0
  %936 = vmatprep.subr.mxu0 0.0
  %937 = vmatpush2.msra.mxu0 0.0
  %938 = vmatprep.subr.mxu0 0.0
  %939 = vmatpush2.msra.mxu0 0.0
  %940 = vmatprep.mubr.f32.mxu0 0.0
  %941 = vmatmul.mubr.f32.gmra.mxu0 %v803
  %v942 = vpop.f32.mrf.mxu0
  %v943 = vadd.f32 %v800, %v942
  %v944 = vpop.f32.mrf.mxu0
  %v945 = vadd.f32 %v800, %v944
  %946 = vdwg.mxu0
  %947 = vst [vmem:[%s4] sm:$0xff] %v872
  %948 = vst [vmem:[%s4 + $0x8] sm:$0xff] %v874
  %949 = vst [vmem:[%s4 + $0x10] sm:$0xff] %v943
  %950 = vst [vmem:[%s4 + $0x18] sm:$0xff] %v945
  // Predicated region
  $region18: #{block_forward.1} parent=0 // pred_check
    _
  $region19: #{block_forward.1} parent=0 // pred_check_branch
    %952 = sbr.rel (0) target = $region21
  $region20: #{block_forward.1} parent=0 // pred_region
    _
  $region21: #{block_forward.1} parent=0 // pred_fallthru
    _
  // Predicated region
  $region22: #{block_forward.1} parent=0 // pred_check
    _
  $region23: #{block_forward.1} parent=0 // pred_check_branch
    %954 = sbr.rel (0) target = $region25
  $region24: #{block_forward.1} parent=0 // pred_region
    _
  $region25: #{block_forward.1} parent=0 // pred_fallthru
    _

</llo_original>
